<compile_context>
chip_gen: v6e
topology: v6e:2x2x1
jax: 0.10.0
libtpu: 0.0.40
codegen_flags: <defaults>
</compile_context>

<pallas_src>
from functools import partial

import jax
import jax.numpy as jnp
from jax.experimental import pallas as pl
from jax.experimental.pallas import tpu as pltpu


def _multi_interest_kernel(x_ref, ids_ref, w1_ref, cs1_ref, b1_ref, w2_ref,
                           b2_ref, o_ref, *, compute_dtype):
    # x_ref  : (TB, S, E)  item_seq_emb tile, original (f32) dtype
    # ids_ref: (TB, S)     int32 item ids (0 == padding)
    # w1_ref : (E, D)      linear1 weight (in, out), compute dtype
    # cs1_ref: (1, D)      f32 column-sums of w1 (mask fold term)
    # b1_ref : (1, D)      f32
    # w2_ref : (D, K)      linear2 weight (in, out), compute dtype
    # b2_ref : (1, K)      f32
    # o_ref  : (TB, K*E)   lane-dense output slab
    tb, s, e = x_ref.shape
    d = w1_ref.shape[1]
    k = w2_ref.shape[1]

    x = x_ref[...]                                    # (TB, S, E) f32 (orig dtype)
    xc = x.astype(compute_dtype)                      # in-kernel cast (no HBM copy)

    # linear1 over the flattened (TB*S, E) slab; f32 MXU accumulation.
    h = jnp.dot(xc.reshape(tb * s, e), w1_ref[...],
                preferred_element_type=jnp.float32).reshape(tb, s, d)

    # Folded padding mask: (x + m*1_E) @ W1 == x @ W1 + m * colsum(W1).
    mask = jnp.where(ids_ref[...] > 0, 0.0, -10000.0)            # (TB, S) f32
    h = h + b1_ref[...] + mask[:, :, None] * cs1_ref[...]
    h = jnp.tanh(h.astype(compute_dtype))             # bf16 EUP on v6e/v7x path

    # linear2 -> attention logits, f32.
    a = jnp.dot(h.reshape(tb * s, d), w2_ref[...],
                preferred_element_type=jnp.float32).reshape(tb, s, k)
    a = a + b2_ref[...]

    # Softmax over the sequence axis (PyTorch dim=1), f32.
    a = a - jnp.max(a, axis=1, keepdims=True)
    ea = jnp.exp(a)
    denom = jnp.sum(ea, axis=1, keepdims=True)
    if compute_dtype == jnp.dtype(jnp.float32):
        p = ea / denom                                 # exact on the f32 path
    else:
        p = ea * pl.reciprocal(denom, approx=True)     # EUP slot, ~free

    # out[b, j*E + e] = sum_s p[b, s, j] * x[b, s, e], computed lane-dense on a
    # (TB, S, K*E) slab (VPU multiply + sublane reduce over S) instead of TB
    # tiny batched MXU matmuls.  K is a small static int, so the loop unrolls.
    x_rep = jnp.concatenate([x] * k, axis=-1)                          # (TB,S,K*E)
    p_rep = jnp.concatenate(
        [jnp.broadcast_to(p[:, :, j:j + 1], (tb, s, e)) for j in range(k)],
        axis=-1)                                                       # (TB,S,K*E)
    o_ref[...] = jnp.sum(p_rep * x_rep, axis=1).astype(o_ref.dtype)


def _choose_tb(B, block_b):
    """Batch tile: as large as block_b allows, a multiple of 8, and capped at
    ~ceil(B/2) so the grid has >= 2 steps (lets v7x shard across its 2 TCs)."""
    if B <= 8:
        return B
    half = (((B + 1) // 2) + 7) // 8 * 8      # ceil(B/2) rounded up to mult of 8
    tb = min(max(8, (block_b // 8) * 8), half)
    return tb


def _vmem_limit_bytes(tb, S, E, D, K):
    lane = lambda n: ((n + 127) // 128) * 128
    # Double-buffered pipeline blocks: x (f32), ids (i32), out (f32).
    blocks = 2 * tb * (S * lane(E) + lane(S) + lane(K * E)) * 4
    # In-kernel intermediates: bf16 x copy, f32 h / mask-term, f32 probs and the
    # lane-dense product slab (generous factors for temporaries).
    interm = tb * S * (2 * lane(E) + 3 * lane(D) * 4 + 4 * lane(K * E) * 4)
    est = blocks + interm + (4 << 20)
    return int(min(max(est, 32 << 20), 64 << 20))   # valid on v5e/v6e/v7x


def multi_interest_sa(item_seq_emb, masked_item_seq, w1, b1, w2, b2,
                      *, block_b=1024, compute_dtype=jnp.bfloat16):
    """item_seq_emb: (B,S,E) f32; masked_item_seq: (B,S) int (0 == padding).
       w1: (E,D), b1: (D,), w2: (D,K), b2: (K,). Returns (B,K,E)."""
    B, S, E = item_seq_emb.shape
    D = w1.shape[1]
    K = w2.shape[1]
    out_dtype = item_seq_emb.dtype
    compute_dtype = jnp.dtype(compute_dtype)

    tb = _choose_tb(B, block_b)
    grid = (pl.cdiv(B, tb),)

    # Only the tiny weight tensors are touched in the wrapper; the big x tensor
    # is passed to the kernel untouched (no extra HBM pass).
    ids = masked_item_seq.astype(jnp.int32)
    w1_c = w1.astype(compute_dtype)
    w2_c = w2.astype(compute_dtype)
    cs1 = jnp.sum(w1.astype(jnp.float32), axis=0, keepdims=True)   # (1, D) f32
    b1_2d = b1.reshape(1, D).astype(jnp.float32)
    b2_2d = b2.reshape(1, K).astype(jnp.float32)

    kernel = partial(_multi_interest_kernel, compute_dtype=compute_dtype)

    grid_spec = pltpu.PrefetchScalarGridSpec(
        num_scalar_prefetch=0,
        grid=grid,
        in_specs=[
            pl.BlockSpec((tb, S, E), lambda b: (b, 0, 0)),   # x
            pl.BlockSpec((tb, S), lambda b: (b, 0)),         # ids
            pl.BlockSpec((E, D), lambda b: (0, 0)),          # w1
            pl.BlockSpec((1, D), lambda b: (0, 0)),          # colsum(w1)
            pl.BlockSpec((1, D), lambda b: (0, 0)),          # b1
            pl.BlockSpec((D, K), lambda b: (0, 0)),          # w2
            pl.BlockSpec((1, K), lambda b: (0, 0)),          # b2
        ],
        out_specs=pl.BlockSpec((tb, K * E), lambda b: (b, 0)),
    )

    out_flat = pl.pallas_call(
        kernel,
        out_shape=jax.ShapeDtypeStruct((B, K * E), out_dtype),
        grid_spec=grid_spec,
        compiler_params=pltpu.CompilerParams(
            dimension_semantics=("parallel",),
            vmem_limit_bytes=_vmem_limit_bytes(tb, S, E, D, K)),
    )(item_seq_emb, ids, w1_c, cs1, b1_2d, w2_c, b2_2d)

    return out_flat.reshape(B, K, E)


def reference_jax(item_seq_emb, masked_item_seq, w1, b1, w2, b2):
    hp = jax.lax.Precision.HIGHEST
    attn = (masked_item_seq > 0).astype(item_seq_emb.dtype)
    ext = ((1.0 - attn) * -10000.0)[..., None]
    h = jnp.tanh(jnp.einsum("bse,ed->bsd", item_seq_emb + ext, w1, precision=hp) + b1)
    a = jnp.einsum("bsd,dk->bsk", h, w2, precision=hp) + b2
    a = jax.nn.softmax(a, axis=1)
    return jnp.einsum("bsk,bse->bke", a, item_seq_emb, precision=hp)


if __name__ == "__main__":
    # Module config: embedding_dim=32, interest_num=4, d = 4 * embedding_dim.
    # B=16 -> tb=8 -> grid=(2,): two parallel steps (shards across v7x's 2 TCs).
    B, S, E, K = 16, 8, 32, 4
    D = 4 * E

    key = jax.random.PRNGKey(0)
    k_x, k_m, k_w1, k_b1, k_w2, k_b2 = jax.random.split(key, 6)

    item_seq_emb = jax.random.normal(k_x, (B, S, E), dtype=jnp.float32)
    # masked_item_seq: item ids, 0 = padding. Mix of pad / non-pad positions.
    masked_item_seq = jax.random.randint(k_m, (B, S), minval=0, maxval=3).astype(jnp.int32)

    w1 = jax.random.normal(k_w1, (E, D), dtype=jnp.float32) * (2.0 / (E + D)) ** 0.5
    b1 = jax.random.normal(k_b1, (D,), dtype=jnp.float32) * 0.01
    w2 = jax.random.normal(k_w2, (D, K), dtype=jnp.float32) * (2.0 / (D + K)) ** 0.5
    b2 = jax.random.normal(k_b2, (K,), dtype=jnp.float32) * 0.01

    ref = reference_jax(item_seq_emb, masked_item_seq, w1, b1, w2, b2)

    # f32 compute path (exact reciprocal; tolerance allows for MXU pass behavior
    # on f32 operands and the algebraic mask fold).
    out_f32 = multi_interest_sa(item_seq_emb, masked_item_seq, w1, b1, w2, b2,
                                compute_dtype=jnp.float32)
    out_f32 = jax.block_until_ready(out_f32)
    assert out_f32.shape == (B, K, E), out_f32.shape
    assert jnp.allclose(out_f32, ref, atol=2e-2, rtol=2e-2), \
        float(jnp.abs(out_f32 - ref).max())

    # bf16 matmul/tanh path (default perf config for v6e/v7x): looser tolerance.
    out_bf16 = multi_interest_sa(item_seq_emb, masked_item_seq, w1, b1, w2, b2,
                                 compute_dtype=jnp.bfloat16)
    out_bf16 = jax.block_until_ready(out_bf16)
    assert out_bf16.shape == (B, K, E), out_bf16.shape
    assert jnp.allclose(out_bf16.astype(jnp.float32), ref, atol=6e-2, rtol=6e-2), \
        float(jnp.abs(out_bf16.astype(jnp.float32) - ref).max())

    print("KERNEL_OK")
</pallas_src>

<mosaic_0001>
module attributes {stable_mosaic.version = 11 : i64} {
  func.func @_multi_interest_kernel(%arg0: i32, %arg1: memref<8x8x32xf32, #tpu.memory_space<vmem>>, %arg2: memref<8x8xi32, #tpu.memory_space<vmem>>, %arg3: memref<32x128xf32, #tpu.memory_space<vmem>>, %arg4: memref<1x128xf32, #tpu.memory_space<vmem>>, %arg5: memref<1x128xf32, #tpu.memory_space<vmem>>, %arg6: memref<128x4xf32, #tpu.memory_space<vmem>>, %arg7: memref<1x4xf32, #tpu.memory_space<vmem>>, %arg8: memref<8x128xf32, #tpu.memory_space<vmem>>) attributes {dimension_semantics = [#tpu.dimension_semantics<parallel>], iteration_bounds = array<i64: 2>, scalar_prefetch = 0 : i64, scratch_operands = 0 : i64, tpu.core_type = #tpu.core_type<tc>, window_params = [{transform_indices = @transform_0, window_bounds = array<i64: 8, 8, 32>}, {transform_indices = @transform_1, window_bounds = array<i64: 8, 8>}, {pipeline_mode = #tpu.pipeline_mode<synchronous>, transform_indices = @transform_2, window_bounds = array<i64: 32, 128>}, {pipeline_mode = #tpu.pipeline_mode<synchronous>, transform_indices = @transform_3, window_bounds = array<i64: 1, 128>}, {pipeline_mode = #tpu.pipeline_mode<synchronous>, transform_indices = @transform_4, window_bounds = array<i64: 1, 128>}, {pipeline_mode = #tpu.pipeline_mode<synchronous>, transform_indices = @transform_5, window_bounds = array<i64: 128, 4>}, {pipeline_mode = #tpu.pipeline_mode<synchronous>, transform_indices = @transform_6, window_bounds = array<i64: 1, 4>}, {transform_indices = @transform_7, window_bounds = array<i64: 8, 128>}]} {
    %c0 = arith.constant 0 : index
    %c0_0 = arith.constant 0 : index
    %c0_1 = arith.constant 0 : index
    %0 = vector.load %arg1[%c0, %c0_0, %c0_1] : memref<8x8x32xf32, #tpu.memory_space<vmem>>, vector<8x8x32xf32>
    %1 = vector.shape_cast %0 : vector<8x8x32xf32> to vector<64x32xf32>
    %c0_2 = arith.constant 0 : index
    %c0_3 = arith.constant 0 : index
    %2 = vector.load %arg3[%c0_2, %c0_3] : memref<32x128xf32, #tpu.memory_space<vmem>>, vector<32x128xf32>
    %cst = arith.constant dense<0.000000e+00> : vector<64x128xf32>
    %3 = tpu.matmul %1, %2, %cst {dimension_numbers = #tpu.dot_dimension_numbers<[1], [0], [0], [1], [0, 0, 1, 1], [], []>} : vector<64x32xf32>, vector<32x128xf32>, vector<64x128xf32> -> vector<64x128xf32>
    %4 = vector.shape_cast %3 : vector<64x128xf32> to vector<8x8x128xf32>
    %c0_4 = arith.constant 0 : index
    %c0_5 = arith.constant 0 : index
    %5 = vector.load %arg2[%c0_4, %c0_5] : memref<8x8xi32, #tpu.memory_space<vmem>>, vector<8x8xi32>
    %c0_i32 = arith.constant 0 : i32
    %6 = vector.broadcast %c0_i32 : i32 to vector<8x8xi32>
    %7 = arith.cmpi sgt, %5, %6 : vector<8x8xi32>
    %cst_6 = arith.constant 0.000000e+00 : f32
    %cst_7 = arith.constant -1.000000e+04 : f32
    %8 = vector.broadcast %cst_6 : f32 to vector<8x8xf32>
    %9 = vector.broadcast %cst_7 : f32 to vector<8x8xf32>
    %10 = arith.select %7, %8, %9 : vector<8x8xi1>, vector<8x8xf32>
    %c0_8 = arith.constant 0 : index
    %c0_9 = arith.constant 0 : index
    %11 = vector.load %arg5[%c0_8, %c0_9] : memref<1x128xf32, #tpu.memory_space<vmem>>, vector<1x128xf32>
    %12 = vector.shape_cast %11 : vector<1x128xf32> to vector<1x1x128xf32>
    %13 = vector.broadcast %12 : vector<1x1x128xf32> to vector<8x8x128xf32>
    %14 = arith.addf %4, %13 : vector<8x8x128xf32>
    %15 = vector.shape_cast %10 : vector<8x8xf32> to vector<8x8x1xf32>
    %c0_10 = arith.constant 0 : index
    %c0_11 = arith.constant 0 : index
    %16 = vector.load %arg4[%c0_10, %c0_11] : memref<1x128xf32, #tpu.memory_space<vmem>>, vector<1x128xf32>
    %17 = vector.shape_cast %16 : vector<1x128xf32> to vector<1x1x128xf32>
    %18 = vector.broadcast %15 : vector<8x8x1xf32> to vector<8x8x128xf32>
    %19 = vector.broadcast %17 : vector<1x1x128xf32> to vector<8x8x128xf32>
    %20 = arith.mulf %18, %19 : vector<8x8x128xf32>
    %21 = arith.addf %14, %20 : vector<8x8x128xf32>
    %22 = math.tanh %21 : vector<8x8x128xf32>
    %23 = vector.shape_cast %22 : vector<8x8x128xf32> to vector<64x128xf32>
    %c0_12 = arith.constant 0 : index
    %c0_13 = arith.constant 0 : index
    %24 = vector.load %arg6[%c0_12, %c0_13] : memref<128x4xf32, #tpu.memory_space<vmem>>, vector<128x4xf32>
    %cst_14 = arith.constant dense<0.000000e+00> : vector<64x4xf32>
    %25 = tpu.matmul %23, %24, %cst_14 {dimension_numbers = #tpu.dot_dimension_numbers<[1], [0], [0], [1], [0, 0, 1, 1], [], []>} : vector<64x128xf32>, vector<128x4xf32>, vector<64x4xf32> -> vector<64x4xf32>
    %26 = vector.shape_cast %25 : vector<64x4xf32> to vector<8x8x4xf32>
    %c0_15 = arith.constant 0 : index
    %c0_16 = arith.constant 0 : index
    %27 = vector.load %arg7[%c0_15, %c0_16] : memref<1x4xf32, #tpu.memory_space<vmem>>, vector<1x4xf32>
    %28 = vector.shape_cast %27 : vector<1x4xf32> to vector<1x1x4xf32>
    %29 = vector.broadcast %28 : vector<1x1x4xf32> to vector<8x8x4xf32>
    %30 = arith.addf %26, %29 : vector<8x8x4xf32>
    %cst_17 = arith.constant dense<0xFF800000> : vector<8x4xf32>
    %31 = vector.multi_reduction <maximumf>, %30, %cst_17 [1] : vector<8x8x4xf32> to vector<8x4xf32>
    %32 = vector.shape_cast %31 : vector<8x4xf32> to vector<8x1x4xf32>
    %33 = vector.broadcast %32 : vector<8x1x4xf32> to vector<8x8x4xf32>
    %34 = arith.subf %30, %33 : vector<8x8x4xf32>
    %35 = math.exp %34 : vector<8x8x4xf32>
    %cst_18 = arith.constant dense<0.000000e+00> : vector<8x4xf32>
    %36 = vector.multi_reduction <add>, %35, %cst_18 [1] : vector<8x8x4xf32> to vector<8x4xf32>
    %37 = vector.shape_cast %36 : vector<8x4xf32> to vector<8x1x4xf32>
    %38 = vector.broadcast %37 : vector<8x1x4xf32> to vector<8x8x4xf32>
    %39 = arith.divf %35, %38 : vector<8x8x4xf32>
    %40 = tpu.concatenate %0, %0, %0, %0 in 2 : vector<8x8x32xf32>, vector<8x8x32xf32>, vector<8x8x32xf32>, vector<8x8x32xf32> -> vector<8x8x128xf32>
    %41 = vector.extract_strided_slice %39 {offsets = [0, 0, 0], sizes = [8, 8, 1], strides = [1, 1, 1]} : vector<8x8x4xf32> to vector<8x8x1xf32>
    %42 = vector.shape_cast %41 : vector<8x8x1xf32> to vector<8x8x1xf32>
    %43 = vector.broadcast %42 : vector<8x8x1xf32> to vector<8x8x32xf32>
    %44 = vector.extract_strided_slice %39 {offsets = [0, 0, 1], sizes = [8, 8, 1], strides = [1, 1, 1]} : vector<8x8x4xf32> to vector<8x8x1xf32>
    %45 = vector.shape_cast %44 : vector<8x8x1xf32> to vector<8x8x1xf32>
    %46 = vector.broadcast %45 : vector<8x8x1xf32> to vector<8x8x32xf32>
    %47 = vector.extract_strided_slice %39 {offsets = [0, 0, 2], sizes = [8, 8, 1], strides = [1, 1, 1]} : vector<8x8x4xf32> to vector<8x8x1xf32>
    %48 = vector.shape_cast %47 : vector<8x8x1xf32> to vector<8x8x1xf32>
    %49 = vector.broadcast %48 : vector<8x8x1xf32> to vector<8x8x32xf32>
    %50 = vector.extract_strided_slice %39 {offsets = [0, 0, 3], sizes = [8, 8, 1], strides = [1, 1, 1]} : vector<8x8x4xf32> to vector<8x8x1xf32>
    %51 = vector.shape_cast %50 : vector<8x8x1xf32> to vector<8x8x1xf32>
    %52 = vector.broadcast %51 : vector<8x8x1xf32> to vector<8x8x32xf32>
    %53 = tpu.concatenate %43, %46, %49, %52 in 2 : vector<8x8x32xf32>, vector<8x8x32xf32>, vector<8x8x32xf32>, vector<8x8x32xf32> -> vector<8x8x128xf32>
    %54 = arith.mulf %53, %40 : vector<8x8x128xf32>
    %cst_19 = arith.constant dense<0.000000e+00> : vector<8x128xf32>
    %55 = vector.multi_reduction <add>, %54, %cst_19 [1] : vector<8x8x128xf32> to vector<8x128xf32>
    %c0_20 = arith.constant 0 : index
    %c0_21 = arith.constant 0 : index
    %56 = vector.load %arg8[%c0_20, %c0_21] : memref<8x128xf32, #tpu.memory_space<vmem>>, vector<8x128xf32>
    tpu.vector_store %arg8[%c0_20, %c0_21], %55 {strides = array<i32>} : memref<8x128xf32, #tpu.memory_space<vmem>>, vector<8x128xf32>,
    return
  }
  func.func @transform_0(%arg0: i32) -> (i32, i32, i32) {
    %c0_i32 = arith.constant 0 : i32
    %c0_i32_0 = arith.constant 0 : i32
    %c0_i32_1 = arith.constant 0 : i32
    return %arg0, %c0_i32, %c0_i32_0 : i32, i32, i32
  }
  func.func @transform_1(%arg0: i32) -> (i32, i32) {
    %c0_i32 = arith.constant 0 : i32
    %c0_i32_0 = arith.constant 0 : i32
    return %arg0, %c0_i32 : i32, i32
  }
  func.func @transform_2(%arg0: i32) -> (i32, i32) {
    %c0_i32 = arith.constant 0 : i32
    %c0_i32_0 = arith.constant 0 : i32
    %c0_i32_1 = arith.constant 0 : i32
    return %c0_i32, %c0_i32_0 : i32, i32
  }
  func.func @transform_3(%arg0: i32) -> (i32, i32) {
    %c0_i32 = arith.constant 0 : i32
    %c0_i32_0 = arith.constant 0 : i32
    %c0_i32_1 = arith.constant 0 : i32
    return %c0_i32, %c0_i32_0 : i32, i32
  }
  func.func @transform_4(%arg0: i32) -> (i32, i32) {
    %c0_i32 = arith.constant 0 : i32
    %c0_i32_0 = arith.constant 0 : i32
    %c0_i32_1 = arith.constant 0 : i32
    return %c0_i32, %c0_i32_0 : i32, i32
  }
  func.func @transform_5(%arg0: i32) -> (i32, i32) {
    %c0_i32 = arith.constant 0 : i32
    %c0_i32_0 = arith.constant 0 : i32
    %c0_i32_1 = arith.constant 0 : i32
    return %c0_i32, %c0_i32_0 : i32, i32
  }
  func.func @transform_6(%arg0: i32) -> (i32, i32) {
    %c0_i32 = arith.constant 0 : i32
    %c0_i32_0 = arith.constant 0 : i32
    %c0_i32_1 = arith.constant 0 : i32
    return %c0_i32, %c0_i32_0 : i32, i32
  }
  func.func @transform_7(%arg0: i32) -> (i32, i32) {
    %c0_i32 = arith.constant 0 : i32
    %c0_i32_0 = arith.constant 0 : i32
    return %arg0, %c0_i32 : i32, i32
  }
}

</mosaic_0001>

<llo_original>
// kernel: tpu_custom_call.1
$region0: #{tpu_custom_call.1}
  #allocation0 [shape = 'u32[]', space=smem, size = 0x4, offset = 0x4, fixed_abs, tag = 'smem constant byte address 0x4 - core index']
  #allocation1 [shape = 'u32[144,128]{1,0:T(1,128)}', space=vmem, size = 0x12000, scoped, tag = 'internal scratch']
  %s0 = inlined_call_operand.vmem [shape: f32[16,8,32], index: 0, kind: input, shape index: {}]
  %s1 = inlined_call_operand.vmem [shape: s32[16,8], index: 1, kind: input, shape index: {}]
  %s2 = inlined_call_operand.hbm [shape: f32[32,128], index: 2, kind: input, shape index: {}]
  %s3 = inlined_call_operand.vmem [shape: f32[1,128], index: 3, kind: input, shape index: {}]
  %s4 = inlined_call_operand.vmem [shape: f32[1,128], index: 4, kind: input, shape index: {}]
  %s5 = inlined_call_operand.vmem [shape: f32[128,4], index: 5, kind: input, shape index: {}]
  %s6 = inlined_call_operand.vmem [shape: f32[1,4], index: 6, kind: input, shape index: {}]
  %s7 = inlined_call_operand.hbm [shape: f32[16,128], index: 7, kind: output, shape index: {}]
  %s8 = sld [smem:[#allocation0]]
  $region65: #{tpu_custom_call.1} parent=0
    _
  %s10 = ssub.s32 1, %s8
  %s11 = scalar_select 0, %s10, %s8
  $region1: #{tpu_custom_call.1} parent=0
    #allocation2 [shape = 'u8[16384]{0}', space=vmem, size = 0x4000, scoped, tag = 'input window, operand 2, single buffered']
    #allocation3 [shape = 's32[2]{0}', space=sflag, size = 0x8, scoped, tag = 'scoped memory for tpu_custom_call.1']
    #allocation4 [shape = 's32[2]{0}', space=sflag, size = 0x8, scoped, tag = 'scoped memory for tpu_custom_call.1']
    #allocation5 [shape = 'u8[8192]{0}', space=vmem, size = 0x2000, scoped, tag = 'output window, operand 0']
    %12 = vsyncpa [#allocation3], 0
    %13 = vsyncpa [#allocation4], 0
    %s14 = scalar_lea.sflag [#allocation4], 1
    %15 = vsyncpa %s14, 0
    loop: start=0, step=1, limit=4
    $region2: #{tpu_custom_call.1} parent=1 // loop_pre_header
      _
    $region3: #{tpu_custom_call.1} parent=1 // loop_header
      %s17 = sphi 0, %s21
      %p18 = scmp.ge.s32.totalorder %s17, 4
      %s27 = sphi 0, %s29
      %s30 = sphi 0, %s27
      %s31 = sphi 0, %s30
      %s47 = sphi 0, %s31
      %s53 = sphi 0, %s55
      %s56 = sphi 0, %s53
      %s57 = sphi 0, %s56
      %s73 = sphi 0, %s57
      %s77 = sphi 0, %s77
      %s79 = sphi 0, %s77
      %s80 = sphi 0, %s79
      %s94 = sphi 0, %s80
      %s98 = sphi 0, %s98
      %s100 = sphi 0, %s98
      %s101 = sphi 0, %s100
      %s115 = sphi 0, %s101
      %s119 = sphi 0, %s119
      %s121 = sphi 0, %s119
      %s122 = sphi 0, %s121
      %s136 = sphi 0, %s122
      %s140 = sphi 0, %s140
      %s142 = sphi 0, %s140
      %s143 = sphi 0, %s142
      %s157 = sphi 0, %s143
      %s161 = sphi 0, %s161
      %s163 = sphi 0, %s161
      %s164 = sphi 0, %s163
      %s178 = sphi 0, %s164
      %s184 = sphi 0, %s186
      %s187 = sphi 0, %s184
      %s188 = sphi 0, %s187
      %s204 = sphi 0, %s188
    $region4: #{tpu_custom_call.1} parent=1 // loop_header_branch
      %20 = sbr.rel (%p18) target = $region8
    $region5: #{tpu_custom_call.1} parent=1 // loop_body
      %s22 = ssub.s32 %s17, 1
      %s23 = ssub.s32 %s17, 2
      %s24 = sadd.s32 %s17, 1
      %s25 = ssub.s32 %s17, %s24
      %p26 = scmp.eq.s32.totalorder %s25, 0
      %s28 = sadd.s32 %s27, 1
      %s29 = scalar_select %p26, %s27, %s28
      %p32 = pneg %p26
      %p33 = scmp.eq.s32.totalorder %s17, 1
      %p34 = por %p32, %p33
      %p35 = scmp.ne.s32.totalorder %s27, %s30
      %p36 = scmp.eq.s32.totalorder %s17, 0
      %p37 = por %p35, %p36
      %p38 = scmp.ne.s32.totalorder %s27, %s30
      %p39 = scmp.eq.s32.totalorder %s22, 1
      %p40 = por %p38, %p39
      %p41 = scmp.ne.s32.totalorder %s30, %s31
      %p42 = scmp.eq.s32.totalorder %s22, 0
      %p43 = por %p41, %p42
      %p44 = scmp.ne.s32.totalorder %s30, %s31
      %p45 = scmp.eq.s32.totalorder %s23, 1
      %p46 = por %p44, %p45
      %p48 = scmp.ne.s32.totalorder %s31, %s47
      %p49 = scmp.eq.s32.totalorder %s23, 0
      %p50 = por %p48, %p49
      %s51 = ssub.s32 %s17, %s24
      %p52 = scmp.eq.s32.totalorder %s51, 0
      %s54 = sadd.s32 %s53, 1
      %s55 = scalar_select %p52, %s53, %s54
      %p58 = pneg %p52
      %p59 = scmp.eq.s32.totalorder %s17, 1
      %p60 = por %p58, %p59
      %p61 = scmp.ne.s32.totalorder %s53, %s56
      %p62 = scmp.eq.s32.totalorder %s17, 0
      %p63 = por %p61, %p62
      %p64 = scmp.ne.s32.totalorder %s53, %s56
      %p65 = scmp.eq.s32.totalorder %s22, 1
      %p66 = por %p64, %p65
      %p67 = scmp.ne.s32.totalorder %s56, %s57
      %p68 = scmp.eq.s32.totalorder %s22, 0
      %p69 = por %p67, %p68
      %p70 = scmp.ne.s32.totalorder %s56, %s57
      %p71 = scmp.eq.s32.totalorder %s23, 1
      %p72 = por %p70, %p71
      %p74 = scmp.ne.s32.totalorder %s57, %s73
      %p75 = scmp.eq.s32.totalorder %s23, 0
      %p76 = por %p74, %p75
      %s78 = sadd.s32 %s77, 1
      %p81 = scmp.eq.s32.totalorder %s17, 1
      %p82 = scmp.ne.s32.totalorder %s77, %s79
      %p83 = scmp.eq.s32.totalorder %s17, 0
      %p84 = por %p82, %p83
      %p85 = scmp.ne.s32.totalorder %s77, %s79
      %p86 = scmp.eq.s32.totalorder %s22, 1
      %p87 = por %p85, %p86
      %p88 = scmp.ne.s32.totalorder %s79, %s80
      %p89 = scmp.eq.s32.totalorder %s22, 0
      %p90 = por %p88, %p89
      %p91 = scmp.ne.s32.totalorder %s79, %s80
      %p92 = scmp.eq.s32.totalorder %s23, 1
      %p93 = por %p91, %p92
      %p95 = scmp.ne.s32.totalorder %s80, %s94
      %p96 = scmp.eq.s32.totalorder %s23, 0
      %p97 = por %p95, %p96
      %s99 = sadd.s32 %s98, 1
      %p102 = scmp.eq.s32.totalorder %s17, 1
      %p103 = scmp.ne.s32.totalorder %s98, %s100
      %p104 = scmp.eq.s32.totalorder %s17, 0
      %p105 = por %p103, %p104
      %p106 = scmp.ne.s32.totalorder %s98, %s100
      %p107 = scmp.eq.s32.totalorder %s22, 1
      %p108 = por %p106, %p107
      %p109 = scmp.ne.s32.totalorder %s100, %s101
      %p110 = scmp.eq.s32.totalorder %s22, 0
      %p111 = por %p109, %p110
      %p112 = scmp.ne.s32.totalorder %s100, %s101
      %p113 = scmp.eq.s32.totalorder %s23, 1
      %p114 = por %p112, %p113
      %p116 = scmp.ne.s32.totalorder %s101, %s115
      %p117 = scmp.eq.s32.totalorder %s23, 0
      %p118 = por %p116, %p117
      %s120 = sadd.s32 %s119, 1
      %p123 = scmp.eq.s32.totalorder %s17, 1
      %p124 = scmp.ne.s32.totalorder %s119, %s121
      %p125 = scmp.eq.s32.totalorder %s17, 0
      %p126 = por %p124, %p125
      %p127 = scmp.ne.s32.totalorder %s119, %s121
      %p128 = scmp.eq.s32.totalorder %s22, 1
      %p129 = por %p127, %p128
      %p130 = scmp.ne.s32.totalorder %s121, %s122
      %p131 = scmp.eq.s32.totalorder %s22, 0
      %p132 = por %p130, %p131
      %p133 = scmp.ne.s32.totalorder %s121, %s122
      %p134 = scmp.eq.s32.totalorder %s23, 1
      %p135 = por %p133, %p134
      %p137 = scmp.ne.s32.totalorder %s122, %s136
      %p138 = scmp.eq.s32.totalorder %s23, 0
      %p139 = por %p137, %p138
      %s141 = sadd.s32 %s140, 1
      %p144 = scmp.eq.s32.totalorder %s17, 1
      %p145 = scmp.ne.s32.totalorder %s140, %s142
      %p146 = scmp.eq.s32.totalorder %s17, 0
      %p147 = por %p145, %p146
      %p148 = scmp.ne.s32.totalorder %s140, %s142
      %p149 = scmp.eq.s32.totalorder %s22, 1
      %p150 = por %p148, %p149
      %p151 = scmp.ne.s32.totalorder %s142, %s143
      %p152 = scmp.eq.s32.totalorder %s22, 0
      %p153 = por %p151, %p152
      %p154 = scmp.ne.s32.totalorder %s142, %s143
      %p155 = scmp.eq.s32.totalorder %s23, 1
      %p156 = por %p154, %p155
      %p158 = scmp.ne.s32.totalorder %s143, %s157
      %p159 = scmp.eq.s32.totalorder %s23, 0
      %p160 = por %p158, %p159
      %s162 = sadd.s32 %s161, 1
      %p165 = scmp.eq.s32.totalorder %s17, 1
      %p166 = scmp.ne.s32.totalorder %s161, %s163
      %p167 = scmp.eq.s32.totalorder %s17, 0
      %p168 = por %p166, %p167
      %p169 = scmp.ne.s32.totalorder %s161, %s163
      %p170 = scmp.eq.s32.totalorder %s22, 1
      %p171 = por %p169, %p170
      %p172 = scmp.ne.s32.totalorder %s163, %s164
      %p173 = scmp.eq.s32.totalorder %s22, 0
      %p174 = por %p172, %p173
      %p175 = scmp.ne.s32.totalorder %s163, %s164
      %p176 = scmp.eq.s32.totalorder %s23, 1
      %p177 = por %p175, %p176
      %p179 = scmp.ne.s32.totalorder %s164, %s178
      %p180 = scmp.eq.s32.totalorder %s23, 0
      %p181 = por %p179, %p180
      %s182 = ssub.s32 %s17, %s24
      %p183 = scmp.eq.s32.totalorder %s182, 0
      %s185 = sadd.s32 %s184, 1
      %s186 = scalar_select %p183, %s184, %s185
      %p189 = pneg %p183
      %p190 = scmp.eq.s32.totalorder %s17, 1
      %p191 = por %p189, %p190
      %p192 = scmp.ne.s32.totalorder %s184, %s187
      %p193 = scmp.eq.s32.totalorder %s17, 0
      %p194 = por %p192, %p193
      %p195 = scmp.ne.s32.totalorder %s184, %s187
      %p196 = scmp.eq.s32.totalorder %s22, 1
      %p197 = por %p195, %p196
      %p198 = scmp.ne.s32.totalorder %s187, %s188
      %p199 = scmp.eq.s32.totalorder %s22, 0
      %p200 = por %p198, %p199
      %p201 = scmp.ne.s32.totalorder %s187, %s188
      %p202 = scmp.eq.s32.totalorder %s23, 1
      %p203 = por %p201, %p202
      %p205 = scmp.ne.s32.totalorder %s188, %s204
      %p206 = scmp.eq.s32.totalorder %s23, 0
      %p207 = por %p205, %p206
      %p208 = scmp.le.s32.totalorder 1, %s17
      %p209 = scmp.lt.s32.totalorder %s17, 3
      %p210 = pnand %p208, %p209
      %p211 = pneg %p210
      // Predicated region
      $region9: #{tpu_custom_call.1} parent=5 // pred_check
        _
      $region10: #{tpu_custom_call.1} parent=5 // pred_check_branch
        %213 = sbr.rel (%p210) target = $region12
      $region11: #{tpu_custom_call.1} parent=5 // pred_region
        %s214 = ssub.s32 %s17, 1
        // Predicated region
        $region13: #{tpu_custom_call.1} parent=11 // pred_check
          %p215 = pneg %p90
        $region14: #{tpu_custom_call.1} parent=11 // pred_check_branch
          %217 = sbr.rel (%p215) target = $region16
        $region15: #{tpu_custom_call.1} parent=11 // pred_region
          %s219 = ssub.s32 512, 512
          %220 = vsyncadd [#allocation3], %s219
          %s221 = sshll.u32 [#allocation2], 4
          %s222 = int_to_ptr.vmem [resolvable:$true] %s221
          %227 = dma.hbm_to_vmem [thread:$0]  %s2, 512, %s222, [#allocation3], 128, 128, 8
        $region16: #{tpu_custom_call.1} parent=11 // pred_fallthru
          _
        // Predicated region
        $region17: #{tpu_custom_call.1} parent=11 // pred_check
          %p228 = pneg %p111
        $region18: #{tpu_custom_call.1} parent=11 // pred_check_branch
          %230 = sbr.rel (%p228) target = $region20
        $region19: #{tpu_custom_call.1} parent=11 // pred_region
          _
        $region20: #{tpu_custom_call.1} parent=11 // pred_fallthru
          _
        // Predicated region
        $region21: #{tpu_custom_call.1} parent=11 // pred_check
          %p231 = pneg %p132
        $region22: #{tpu_custom_call.1} parent=11 // pred_check_branch
          %233 = sbr.rel (%p231) target = $region24
        $region23: #{tpu_custom_call.1} parent=11 // pred_region
          _
        $region24: #{tpu_custom_call.1} parent=11 // pred_fallthru
          _
        // Predicated region
        $region25: #{tpu_custom_call.1} parent=11 // pred_check
          %p234 = pneg %p153
        $region26: #{tpu_custom_call.1} parent=11 // pred_check_branch
          %236 = sbr.rel (%p234) target = $region28
        $region27: #{tpu_custom_call.1} parent=11 // pred_region
          _
        $region28: #{tpu_custom_call.1} parent=11 // pred_fallthru
          _
        // Predicated region
        $region29: #{tpu_custom_call.1} parent=11 // pred_check
          %p237 = pneg %p174
        $region30: #{tpu_custom_call.1} parent=11 // pred_check_branch
          %239 = sbr.rel (%p237) target = $region32
        $region31: #{tpu_custom_call.1} parent=11 // pred_region
          _
        $region32: #{tpu_custom_call.1} parent=11 // pred_fallthru
          _
      $region12: #{tpu_custom_call.1} parent=5 // pred_fallthru
        _
      %p240 = scmp.lt.s32.totalorder %s17, 2
      // Predicated region
      $region33: #{tpu_custom_call.1} parent=5 // pred_check
        %p241 = pneg %p240
      $region34: #{tpu_custom_call.1} parent=5 // pred_check_branch
        %243 = sbr.rel (%p241) target = $region36
      $region35: #{tpu_custom_call.1} parent=5 // pred_region
        // Predicated region
        $region37: #{tpu_custom_call.1} parent=35 // pred_check
          %p244 = pneg %p37
        $region38: #{tpu_custom_call.1} parent=35 // pred_check_branch
          %246 = sbr.rel (%p244) target = $region40
        $region39: #{tpu_custom_call.1} parent=35 // pred_region
          %s247 = smul.u32 8, %s17
          %p248 = scmp.lt.s32.totalorder %s247, 15
          %s249 = scalar_select %p248, %s247, 15
          %s250 = smul.addr %s249, 8
          %s251 = scalar_lea.vmem %s0, %s250
          %s252 = smul.u32 8, %s17
        $region40: #{tpu_custom_call.1} parent=35 // pred_fallthru
          _
        // Predicated region
        $region41: #{tpu_custom_call.1} parent=35 // pred_check
          %p253 = pneg %p63
        $region42: #{tpu_custom_call.1} parent=35 // pred_check_branch
          %255 = sbr.rel (%p253) target = $region44
        $region43: #{tpu_custom_call.1} parent=35 // pred_region
          %p256 = scmp.lt.s32.totalorder %s17, 1
          %s257 = scalar_select %p256, %s17, 1
          %s258 = smul.addr %s257, 8
          %s259 = scalar_lea.vmem %s1, %s258
        $region44: #{tpu_custom_call.1} parent=35 // pred_fallthru
          _
      $region36: #{tpu_custom_call.1} parent=5 // pred_fallthru
        _
      %p260 = scmp.le.s32.totalorder 1, %s17
      %p261 = scmp.lt.s32.totalorder %s17, 3
      %p262 = pnand %p260, %p261
      %p263 = pneg %p262
      // Predicated region
      $region45: #{tpu_custom_call.1} parent=5 // pred_check
        _
      $region46: #{tpu_custom_call.1} parent=5 // pred_check_branch
        %265 = sbr.rel (%p262) target = $region48
      $region47: #{tpu_custom_call.1} parent=5 // pred_region
        %s266 = ssub.s32 %s17, 1
        // Predicated region
        $region49: #{tpu_custom_call.1} parent=47 // pred_check
          %p267 = pneg %p90
        $region50: #{tpu_custom_call.1} parent=47 // pred_check_branch
          %269 = sbr.rel (%p267) target = $region52
        $region51: #{tpu_custom_call.1} parent=47 // pred_region
          %270 = dma.done [#allocation3], 512
        $region52: #{tpu_custom_call.1} parent=47 // pred_fallthru
          _
        %s271 = smul.u32 8, %s22
        %p272 = scmp.lt.s32.totalorder %s271, 15
        %s273 = scalar_select %p272, %s271, 15
        %s274 = smul.addr %s273, 8
        %s275 = scalar_lea.vmem %s0, %s274
        %p276 = pneg %p43
        %p277 = pneg %p40
        %p278 = scmp.lt.s32.totalorder %s22, 1
        %s279 = scalar_select %p278, %s22, 1
        %s280 = smul.addr %s279, 8
        %s281 = scalar_lea.vmem %s1, %s280
        %p282 = pneg %p69
        %p283 = pneg %p66
        %p284 = pneg %p90
        %p285 = pneg %p87
        %p286 = pneg %p111
        %p287 = pneg %p108
        %p288 = pneg %p132
        %p289 = pneg %p129
        %p290 = pneg %p153
        %p291 = pneg %p150
        %p292 = pneg %p174
        %p293 = pneg %p171
        %p294 = pneg %p200
        %p295 = pneg %p197
        %s296 = sand.u32 %s187, 1
        %s297 = scalar_lea.sflag [#allocation4], %s296
        %s298 = sand.u32 %s187, 1
        %s299 = smul.addr %s298, 8
        %s300 = scalar_lea.vmem [#allocation5], %s299
        %s301 = smul.u32 8, %s22
        %p302 = scmp.lt.s32.totalorder %s301, 15
        %s303 = scalar_select %p302, %s301, 15
        %s304 = smul.addr %s303, 8
        %s305 = scalar_lea.vmem %s0, %s304
        %s306 = smul.u32 8, %s22
        %p307 = scmp.lt.s32.totalorder %s22, 1
        %s308 = scalar_select %p307, %s22, 1
        %s309 = smul.addr %s308, 8
        %s310 = scalar_lea.vmem %s1, %s309
        %v311 = vld [vmem:[%s305] sm:$0xff]
        %v312 = vld [vmem:[%s305 + $0x8] sm:$0xff]
        %v313 = vld [vmem:[%s305 + $0x10] sm:$0xff]
        %v314 = vld [vmem:[%s305 + $0x18] sm:$0xff]
        %v315 = vld [vmem:[%s305 + $0x20] sm:$0xff]
        %v316 = vld [vmem:[%s305 + $0x28] sm:$0xff]
        %v317 = vld [vmem:[%s305 + $0x30] sm:$0xff]
        %v318 = vld [vmem:[%s305 + $0x38] sm:$0xff]
        %v319 = vld [vmem:[#allocation2] sm:$0xff]
        %v320 = vld [vmem:[#allocation2 + $0x8] sm:$0xff]
        %v321 = vld [vmem:[#allocation2 + $0x10] sm:$0xff]
        %v322 = vld [vmem:[#allocation2 + $0x18] sm:$0xff]
        %vm323 = vcmask 261120
        %v325 = vsel %vm323, %v311, 0
        %v328 = vsel %vm323, %v312, 0
        %v331 = vsel %vm323, %v313, 0
        %v334 = vsel %vm323, %v314, 0
        %v337 = vsel %vm323, %v315, 0
        %v340 = vsel %vm323, %v316, 0
        %v343 = vsel %vm323, %v317, 0
        %v346 = vsel %vm323, %v318, 0
        %348 = vmatprep.subr.mxu0 0.0
        %349 = vmatpush1.msra.mxu0 0.0
        %350 = vmatprep.subr.mxu0 0.0
        %351 = vmatpush1.msra.mxu0 0.0
        %352 = vmatprep.subr.mxu0 0.0
        %353 = vmatpush1.msra.mxu0 0.0
        %354 = vmatprep.subr.mxu0 0.0
        %355 = vmatpush1.msra.mxu0 0.0
        %356 = vmatprep.subr.mxu0 0.0
        %357 = vmatpush1.msra.mxu0 0.0
        %358 = vmatprep.subr.mxu0 0.0
        %359 = vmatpush1.msra.mxu0 0.0
        %360 = vmatprep.subr.mxu0 0.0
        %361 = vmatpush1.msra.mxu0 0.0
        %362 = vmatprep.subr.mxu0 0.0
        %363 = vmatpush1.msra.mxu0 0.0
        %364 = vmatprep.subr.mxu0 0.0
        %365 = vmatpush1.msra.mxu0 0.0
        %366 = vmatprep.subr.mxu0 0.0
        %367 = vmatpush1.msra.mxu0 0.0
        %368 = vmatprep.subr.mxu0 0.0
        %369 = vmatpush1.msra.mxu0 0.0
        %370 = vmatprep.subr.mxu0 0.0
        %371 = vmatpush1.msra.mxu0 0.0
        %372 = vmatprep.subr.mxu0 0.0
        %373 = vmatpush1.msra.mxu0 %v322
        %374 = vmatprep.subr.mxu0 0.0
        %375 = vmatpush1.msra.mxu0 %v321
        %376 = vmatprep.subr.mxu0 0.0
        %377 = vmatpush1.msra.mxu0 %v320
        %378 = vmatprep.subr.mxu0 0.0
        %379 = vmatpush1.msra.mxu0 %v319
        %380 = vmatprep.subr.mxu0 0.0
        %381 = vmatpush2.msra.mxu0 0.0
        %382 = vmatprep.subr.mxu0 0.0
        %383 = vmatpush2.msra.mxu0 0.0
        %384 = vmatprep.subr.mxu0 0.0
        %385 = vmatpush2.msra.mxu0 0.0
        %386 = vmatprep.subr.mxu0 0.0
        %387 = vmatpush2.msra.mxu0 0.0
        %388 = vmatprep.subr.mxu0 0.0
        %389 = vmatpush2.msra.mxu0 0.0
        %390 = vmatprep.subr.mxu0 0.0
        %391 = vmatpush2.msra.mxu0 0.0
        %392 = vmatprep.subr.mxu0 0.0
        %393 = vmatpush2.msra.mxu0 0.0
        %394 = vmatprep.subr.mxu0 0.0
        %395 = vmatpush2.msra.mxu0 0.0
        %396 = vmatprep.subr.mxu0 0.0
        %397 = vmatpush2.msra.mxu0 0.0
        %398 = vmatprep.subr.mxu0 0.0
        %399 = vmatpush2.msra.mxu0 0.0
        %400 = vmatprep.subr.mxu0 0.0
        %401 = vmatpush2.msra.mxu0 0.0
        %402 = vmatprep.subr.mxu0 0.0
        %403 = vmatpush2.msra.mxu0 0.0
        %404 = vmatprep.subr.mxu0 0.0
        %405 = vmatpush2.msra.mxu0 0.0
        %406 = vmatprep.subr.mxu0 0.0
        %407 = vmatpush2.msra.mxu0 0.0
        %408 = vmatprep.subr.mxu0 0.0
        %409 = vmatpush2.msra.mxu0 0.0
        %410 = vmatprep.subr.mxu0 0.0
        %411 = vmatpush2.msra.mxu0 0.0
        %412 = vmatprep.mubr.f32.mxu0 0.0
        %413 = vmatmul.mubr.f32.gmra.mxu0 %v325
        %v414 = vpop.f32.mrf.mxu0
        %v415 = vadd.f32 0.0, %v414
        %v416 = vpop.f32.mrf.mxu0
        %417 = vmatprep.mubr.f32.mxu0 0.0
        %418 = vmatmul.mubr.f32.gmra.mxu0 %v328
        %v419 = vpop.f32.mrf.mxu0
        %v420 = vadd.f32 0.0, %v419
        %v421 = vpop.f32.mrf.mxu0
        %422 = vmatprep.mubr.f32.mxu0 0.0
        %423 = vmatmul.mubr.f32.gmra.mxu0 %v331
        %v424 = vpop.f32.mrf.mxu0
        %v425 = vadd.f32 0.0, %v424
        %v426 = vpop.f32.mrf.mxu0
        %427 = vmatprep.mubr.f32.mxu0 0.0
        %428 = vmatmul.mubr.f32.gmra.mxu0 %v334
        %v429 = vpop.f32.mrf.mxu0
        %v430 = vadd.f32 0.0, %v429
        %v431 = vpop.f32.mrf.mxu0
        %432 = vmatprep.mubr.f32.mxu0 0.0
        %433 = vmatmul.mubr.f32.gmra.mxu0 %v337
        %v434 = vpop.f32.mrf.mxu0
        %v435 = vadd.f32 0.0, %v434
        %v436 = vpop.f32.mrf.mxu0
        %437 = vmatprep.mubr.f32.mxu0 0.0
        %438 = vmatmul.mubr.f32.gmra.mxu0 %v340
        %v439 = vpop.f32.mrf.mxu0
        %v440 = vadd.f32 0.0, %v439
        %v441 = vpop.f32.mrf.mxu0
        %442 = vmatprep.mubr.f32.mxu0 0.0
        %443 = vmatmul.mubr.f32.gmra.mxu0 %v343
        %v444 = vpop.f32.mrf.mxu0
        %v445 = vadd.f32 0.0, %v444
        %v446 = vpop.f32.mrf.mxu0
        %447 = vmatprep.mubr.f32.mxu0 0.0
        %448 = vmatmul.mubr.f32.gmra.mxu0 %v346
        %v449 = vpop.f32.mrf.mxu0
        %v450 = vadd.f32 0.0, %v449
        %v451 = vpop.f32.mrf.mxu0
        %452 = vdwg.mxu0
        %v453 = vld [vmem:[%s310] sm:$0xff]
        %vm454 = vcmp.gt.s32.totalorder %v453, 0
        %v455 = vsel %vm454, 0.0, -10000.0
        %v456 = vld [vmem:[%s4] sm:$0x1]
        %v458 = vlaneseq
        %v459 = vshrl.u32 %v458, 7
        %v460 = vsub.s32 0, %v459
        %v461 = vrot.slane %v456, %v460
        %v463 = vadd.f32 %v415, %v461
        %v464 = vadd.f32 %v420, %v461
        %v465 = vadd.f32 %v425, %v461
        %v466 = vadd.f32 %v430, %v461
        %v467 = vadd.f32 %v435, %v461
        %v468 = vadd.f32 %v440, %v461
        %v469 = vadd.f32 %v445, %v461
        %v470 = vadd.f32 %v450, %v461
        %v471 = vlaneseq
        %v472 = vshrl.u32 %v471, 7
        %v473 = vsub.s32 0, %v472
        %v474 = vrot.slane %v455, %v473
        %476 = vbcast.lane.b32.xlu0 %v474, 256
        %v477 = vpop.permute.xlu0 %476
        %v478 = vlaneseq
        %v479 = vshrl.u32 %v478, 7
        %v480 = vsub.s32 1, %v479
        %v481 = vrot.slane %v455, %v480
        %483 = vbcast.lane.b32.xlu0 %v481, 256
        %v484 = vpop.permute.xlu0 %483
        %v485 = vlaneseq
        %v486 = vshrl.u32 %v485, 7
        %v487 = vsub.s32 2, %v486
        %v488 = vrot.slane %v455, %v487
        %490 = vbcast.lane.b32.xlu0 %v488, 256
        %v491 = vpop.permute.xlu0 %490
        %v492 = vlaneseq
        %v493 = vshrl.u32 %v492, 7
        %v494 = vsub.s32 3, %v493
        %v495 = vrot.slane %v455, %v494
        %497 = vbcast.lane.b32.xlu0 %v495, 256
        %v498 = vpop.permute.xlu0 %497
        %v499 = vlaneseq
        %v500 = vshrl.u32 %v499, 7
        %v501 = vsub.s32 4, %v500
        %v502 = vrot.slane %v455, %v501
        %504 = vbcast.lane.b32.xlu0 %v502, 256
        %v505 = vpop.permute.xlu0 %504
        %v506 = vlaneseq
        %v507 = vshrl.u32 %v506, 7
        %v508 = vsub.s32 5, %v507
        %v509 = vrot.slane %v455, %v508
        %511 = vbcast.lane.b32.xlu0 %v509, 256
        %v512 = vpop.permute.xlu0 %511
        %v513 = vlaneseq
        %v514 = vshrl.u32 %v513, 7
        %v515 = vsub.s32 6, %v514
        %v516 = vrot.slane %v455, %v515
        %518 = vbcast.lane.b32.xlu0 %v516, 256
        %v519 = vpop.permute.xlu0 %518
        %v520 = vlaneseq
        %v521 = vshrl.u32 %v520, 7
        %v522 = vsub.s32 7, %v521
        %v523 = vrot.slane %v455, %v522
        %525 = vbcast.lane.b32.xlu0 %v523, 256
        %v526 = vpop.permute.xlu0 %525
        %v527 = vld [vmem:[%s3] sm:$0x1]
        %v529 = vlaneseq
        %v530 = vshrl.u32 %v529, 7
        %v531 = vsub.s32 0, %v530
        %v532 = vrot.slane %v527, %v531
        %v534 = vmul.f32 %v477, %v532
        %v535 = vmul.f32 %v484, %v532
        %v536 = vmul.f32 %v491, %v532
        %v537 = vmul.f32 %v498, %v532
        %v538 = vmul.f32 %v505, %v532
        %v539 = vmul.f32 %v512, %v532
        %v540 = vmul.f32 %v519, %v532
        %v541 = vmul.f32 %v526, %v532
        %v542 = vadd.f32 %v463, %v534
        %v543 = vadd.f32 %v464, %v535
        %v544 = vadd.f32 %v465, %v536
        %v545 = vadd.f32 %v466, %v537
        %v546 = vadd.f32 %v467, %v538
        %v547 = vadd.f32 %v468, %v539
        %v548 = vadd.f32 %v469, %v540
        %v549 = vadd.f32 %v470, %v541
        %v550 = vtanh.pop %v542
        %v551 = vtanh.pop %v543
        %v552 = vtanh.pop %v544
        %v553 = vtanh.pop %v545
        %v554 = vtanh.pop %v546
        %v555 = vtanh.pop %v547
        %v556 = vtanh.pop %v548
        %v557 = vtanh.pop %v549
        %v558 = vld [vmem:[%s5] sm:$0xff]
        %v559 = vld [vmem:[%s5 + $0x8] sm:$0xff]
        %v560 = vld [vmem:[%s5 + $0x10] sm:$0xff]
        %v561 = vld [vmem:[%s5 + $0x18] sm:$0xff]
        %v562 = vld [vmem:[%s5 + $0x20] sm:$0xff]
        %v563 = vld [vmem:[%s5 + $0x28] sm:$0xff]
        %v564 = vld [vmem:[%s5 + $0x30] sm:$0xff]
        %v565 = vld [vmem:[%s5 + $0x38] sm:$0xff]
        %v566 = vld [vmem:[%s5 + $0x40] sm:$0xff]
        %v567 = vld [vmem:[%s5 + $0x48] sm:$0xff]
        %v568 = vld [vmem:[%s5 + $0x50] sm:$0xff]
        %v569 = vld [vmem:[%s5 + $0x58] sm:$0xff]
        %v570 = vld [vmem:[%s5 + $0x60] sm:$0xff]
        %v571 = vld [vmem:[%s5 + $0x68] sm:$0xff]
        %v572 = vld [vmem:[%s5 + $0x70] sm:$0xff]
        %v573 = vld [vmem:[%s5 + $0x78] sm:$0xff]
        %574 = vmatprep.subr.mxu0 0.0
        %575 = vmatpush1.msra.mxu0 %v573
        %576 = vmatprep.subr.mxu0 0.0
        %577 = vmatpush1.msra.mxu0 %v572
        %578 = vmatprep.subr.mxu0 0.0
        %579 = vmatpush1.msra.mxu0 %v571
        %580 = vmatprep.subr.mxu0 0.0
        %581 = vmatpush1.msra.mxu0 %v570
        %582 = vmatprep.subr.mxu0 0.0
        %583 = vmatpush1.msra.mxu0 %v569
        %584 = vmatprep.subr.mxu0 0.0
        %585 = vmatpush1.msra.mxu0 %v568
        %586 = vmatprep.subr.mxu0 0.0
        %587 = vmatpush1.msra.mxu0 %v567
        %588 = vmatprep.subr.mxu0 0.0
        %589 = vmatpush1.msra.mxu0 %v566
        %590 = vmatprep.subr.mxu0 0.0
        %591 = vmatpush1.msra.mxu0 %v565
        %592 = vmatprep.subr.mxu0 0.0
        %593 = vmatpush1.msra.mxu0 %v564
        %594 = vmatprep.subr.mxu0 0.0
        %595 = vmatpush1.msra.mxu0 %v563
        %596 = vmatprep.subr.mxu0 0.0
        %597 = vmatpush1.msra.mxu0 %v562
        %598 = vmatprep.subr.mxu0 0.0
        %599 = vmatpush1.msra.mxu0 %v561
        %600 = vmatprep.subr.mxu0 0.0
        %601 = vmatpush1.msra.mxu0 %v560
        %602 = vmatprep.subr.mxu0 0.0
        %603 = vmatpush1.msra.mxu0 %v559
        %604 = vmatprep.subr.mxu0 0.0
        %605 = vmatpush1.msra.mxu0 %v558
        %606 = vmatprep.subr.mxu0 0.0
        %607 = vmatpush2.msra.mxu0 0.0
        %608 = vmatprep.subr.mxu0 0.0
        %609 = vmatpush2.msra.mxu0 0.0
        %610 = vmatprep.subr.mxu0 0.0
        %611 = vmatpush2.msra.mxu0 0.0
        %612 = vmatprep.subr.mxu0 0.0
        %613 = vmatpush2.msra.mxu0 0.0
        %614 = vmatprep.subr.mxu0 0.0
        %615 = vmatpush2.msra.mxu0 0.0
        %616 = vmatprep.subr.mxu0 0.0
        %617 = vmatpush2.msra.mxu0 0.0
        %618 = vmatprep.subr.mxu0 0.0
        %619 = vmatpush2.msra.mxu0 0.0
        %620 = vmatprep.subr.mxu0 0.0
        %621 = vmatpush2.msra.mxu0 0.0
        %622 = vmatprep.subr.mxu0 0.0
        %623 = vmatpush2.msra.mxu0 0.0
        %624 = vmatprep.subr.mxu0 0.0
        %625 = vmatpush2.msra.mxu0 0.0
        %626 = vmatprep.subr.mxu0 0.0
        %627 = vmatpush2.msra.mxu0 0.0
        %628 = vmatprep.subr.mxu0 0.0
        %629 = vmatpush2.msra.mxu0 0.0
        %630 = vmatprep.subr.mxu0 0.0
        %631 = vmatpush2.msra.mxu0 0.0
        %632 = vmatprep.subr.mxu0 0.0
        %633 = vmatpush2.msra.mxu0 0.0
        %634 = vmatprep.subr.mxu0 0.0
        %635 = vmatpush2.msra.mxu0 0.0
        %636 = vmatprep.subr.mxu0 0.0
        %637 = vmatpush2.msra.mxu0 0.0
        %638 = vmatprep.mubr.f32.mxu0 0.0
        %639 = vmatmul.mubr.f32.gmra.mxu0 %v550
        %v640 = vpop.f32.mrf.mxu0
        %v641 = vadd.f32 0.0, %v640
        %v642 = vpop.f32.mrf.mxu0
        %643 = vmatprep.mubr.f32.mxu0 0.0
        %644 = vmatmul.mubr.f32.gmra.mxu0 %v551
        %v645 = vpop.f32.mrf.mxu0
        %v646 = vadd.f32 0.0, %v645
        %v647 = vpop.f32.mrf.mxu0
        %648 = vmatprep.mubr.f32.mxu0 0.0
        %649 = vmatmul.mubr.f32.gmra.mxu0 %v552
        %v650 = vpop.f32.mrf.mxu0
        %v651 = vadd.f32 0.0, %v650
        %v652 = vpop.f32.mrf.mxu0
        %653 = vmatprep.mubr.f32.mxu0 0.0
        %654 = vmatmul.mubr.f32.gmra.mxu0 %v553
        %v655 = vpop.f32.mrf.mxu0
        %v656 = vadd.f32 0.0, %v655
        %v657 = vpop.f32.mrf.mxu0
        %658 = vmatprep.mubr.f32.mxu0 0.0
        %659 = vmatmul.mubr.f32.gmra.mxu0 %v554
        %v660 = vpop.f32.mrf.mxu0
        %v661 = vadd.f32 0.0, %v660
        %v662 = vpop.f32.mrf.mxu0
        %663 = vmatprep.mubr.f32.mxu0 0.0
        %664 = vmatmul.mubr.f32.gmra.mxu0 %v555
        %v665 = vpop.f32.mrf.mxu0
        %v666 = vadd.f32 0.0, %v665
        %v667 = vpop.f32.mrf.mxu0
        %668 = vmatprep.mubr.f32.mxu0 0.0
        %669 = vmatmul.mubr.f32.gmra.mxu0 %v556
        %v670 = vpop.f32.mrf.mxu0
        %v671 = vadd.f32 0.0, %v670
        %v672 = vpop.f32.mrf.mxu0
        %673 = vmatprep.mubr.f32.mxu0 0.0
        %674 = vmatmul.mubr.f32.gmra.mxu0 %v557
        %v675 = vpop.f32.mrf.mxu0
        %v676 = vadd.f32 0.0, %v675
        %v677 = vpop.f32.mrf.mxu0
        %678 = vdwg.mxu0
        %v679 = vld [vmem:[%s6] sm:$0x1]
        %v681 = vlaneseq
        %v682 = vshrl.u32 %v681, 7
        %v683 = vsub.s32 0, %v682
        %v684 = vrot.slane %v679, %v683
        %v686 = vadd.f32 %v641, %v684
        %v687 = vadd.f32 %v646, %v684
        %v688 = vadd.f32 %v651, %v684
        %v689 = vadd.f32 %v656, %v684
        %v690 = vadd.f32 %v661, %v684
        %v691 = vadd.f32 %v666, %v684
        %v692 = vadd.f32 %v671, %v684
        %v693 = vadd.f32 %v676, %v684
        %vm694 = vcmask 31744
        %v695 = vsel %vm694, %v686, -inf
        %v696 = vrot.slane %v695, 4
        %v697 = vmax.f32 %v695, %v696
        %v698 = vrot.slane %v697, 2
        %v699 = vmax.f32 %v697, %v698
        %v700 = vrot.slane %v699, 1
        %v701 = vmax.f32 %v699, %v700
        %v702 = vsel %vm694, %v687, -inf
        %v703 = vrot.slane %v702, 4
        %v704 = vmax.f32 %v702, %v703
        %v705 = vrot.slane %v704, 2
        %v706 = vmax.f32 %v704, %v705
        %v707 = vrot.slane %v706, 1
        %v708 = vmax.f32 %v706, %v707
        %v709 = vsel %vm694, %v688, -inf
        %v710 = vrot.slane %v709, 4
        %v711 = vmax.f32 %v709, %v710
        %v712 = vrot.slane %v711, 2
        %v713 = vmax.f32 %v711, %v712
        %v714 = vrot.slane %v713, 1
        %v715 = vmax.f32 %v713, %v714
        %v716 = vsel %vm694, %v689, -inf
        %v717 = vrot.slane %v716, 4
        %v718 = vmax.f32 %v716, %v717
        %v719 = vrot.slane %v718, 2
        %v720 = vmax.f32 %v718, %v719
        %v721 = vrot.slane %v720, 1
        %v722 = vmax.f32 %v720, %v721
        %v723 = vsel %vm694, %v690, -inf
        %v724 = vrot.slane %v723, 4
        %v725 = vmax.f32 %v723, %v724
        %v726 = vrot.slane %v725, 2
        %v727 = vmax.f32 %v725, %v726
        %v728 = vrot.slane %v727, 1
        %v729 = vmax.f32 %v727, %v728
        %v730 = vsel %vm694, %v691, -inf
        %v731 = vrot.slane %v730, 4
        %v732 = vmax.f32 %v730, %v731
        %v733 = vrot.slane %v732, 2
        %v734 = vmax.f32 %v732, %v733
        %v735 = vrot.slane %v734, 1
        %v736 = vmax.f32 %v734, %v735
        %v737 = vsel %vm694, %v692, -inf
        %v738 = vrot.slane %v737, 4
        %v739 = vmax.f32 %v737, %v738
        %v740 = vrot.slane %v739, 2
        %v741 = vmax.f32 %v739, %v740
        %v742 = vrot.slane %v741, 1
        %v743 = vmax.f32 %v741, %v742
        %v744 = vsel %vm694, %v693, -inf
        %v745 = vrot.slane %v744, 4
        %v746 = vmax.f32 %v744, %v745
        %v747 = vrot.slane %v746, 2
        %v748 = vmax.f32 %v746, %v747
        %v749 = vrot.slane %v748, 1
        %v750 = vmax.f32 %v748, %v749
        %v751 = vsub.f32 %v686, %v701
        %v752 = vsub.f32 %v687, %v708
        %v753 = vsub.f32 %v688, %v715
        %v754 = vsub.f32 %v689, %v722
        %v755 = vsub.f32 %v690, %v729
        %v756 = vsub.f32 %v691, %v736
        %v757 = vsub.f32 %v692, %v743
        %v758 = vsub.f32 %v693, %v750
        %v759 = vmul.f32 %v751, 1.442695
        %v760 = vpow.pop %v759
        %v761 = vmul.f32 %v752, 1.442695
        %v762 = vpow.pop %v761
        %v763 = vmul.f32 %v753, 1.442695
        %v764 = vpow.pop %v763
        %v765 = vmul.f32 %v754, 1.442695
        %v766 = vpow.pop %v765
        %v767 = vmul.f32 %v755, 1.442695
        %v768 = vpow.pop %v767
        %v769 = vmul.f32 %v756, 1.442695
        %v770 = vpow.pop %v769
        %v771 = vmul.f32 %v757, 1.442695
        %v772 = vpow.pop %v771
        %v773 = vmul.f32 %v758, 1.442695
        %v774 = vpow.pop %v773
        %v775 = vsel %vm694, %v760, 0.0
        %v776 = vrot.slane %v775, 4
        %v777 = vadd.f32 %v775, %v776
        %v778 = vrot.slane %v777, 2
        %v779 = vadd.f32 %v777, %v778
        %v780 = vrot.slane %v779, 1
        %v781 = vadd.f32 %v779, %v780
        %v782 = vsel %vm694, %v762, 0.0
        %v783 = vrot.slane %v782, 4
        %v784 = vadd.f32 %v782, %v783
        %v785 = vrot.slane %v784, 2
        %v786 = vadd.f32 %v784, %v785
        %v787 = vrot.slane %v786, 1
        %v788 = vadd.f32 %v786, %v787
        %v789 = vsel %vm694, %v764, 0.0
        %v790 = vrot.slane %v789, 4
        %v791 = vadd.f32 %v789, %v790
        %v792 = vrot.slane %v791, 2
        %v793 = vadd.f32 %v791, %v792
        %v794 = vrot.slane %v793, 1
        %v795 = vadd.f32 %v793, %v794
        %v796 = vsel %vm694, %v766, 0.0
        %v797 = vrot.slane %v796, 4
        %v798 = vadd.f32 %v796, %v797
        %v799 = vrot.slane %v798, 2
        %v800 = vadd.f32 %v798, %v799
        %v801 = vrot.slane %v800, 1
        %v802 = vadd.f32 %v800, %v801
        %v803 = vsel %vm694, %v768, 0.0
        %v804 = vrot.slane %v803, 4
        %v805 = vadd.f32 %v803, %v804
        %v806 = vrot.slane %v805, 2
        %v807 = vadd.f32 %v805, %v806
        %v808 = vrot.slane %v807, 1
        %v809 = vadd.f32 %v807, %v808
        %v810 = vsel %vm694, %v770, 0.0
        %v811 = vrot.slane %v810, 4
        %v812 = vadd.f32 %v810, %v811
        %v813 = vrot.slane %v812, 2
        %v814 = vadd.f32 %v812, %v813
        %v815 = vrot.slane %v814, 1
        %v816 = vadd.f32 %v814, %v815
        %v817 = vsel %vm694, %v772, 0.0
        %v818 = vrot.slane %v817, 4
        %v819 = vadd.f32 %v817, %v818
        %v820 = vrot.slane %v819, 2
        %v821 = vadd.f32 %v819, %v820
        %v822 = vrot.slane %v821, 1
        %v823 = vadd.f32 %v821, %v822
        %v824 = vsel %vm694, %v774, 0.0
        %v825 = vrot.slane %v824, 4
        %v826 = vadd.f32 %v824, %v825
        %v827 = vrot.slane %v826, 2
        %v828 = vadd.f32 %v826, %v827
        %v829 = vrot.slane %v828, 1
        %v830 = vadd.f32 %v828, %v829
        %v831 = vrcp.pop %v781
        %v832 = vmul.f32 %v760, %v831
        %v833 = vrcp.pop %v788
        %v834 = vmul.f32 %v762, %v833
        %v835 = vrcp.pop %v795
        %v836 = vmul.f32 %v764, %v835
        %v837 = vrcp.pop %v802
        %v838 = vmul.f32 %v766, %v837
        %v839 = vrcp.pop %v809
        %v840 = vmul.f32 %v768, %v839
        %v841 = vrcp.pop %v816
        %v842 = vmul.f32 %v770, %v841
        %v843 = vrcp.pop %v823
        %v844 = vmul.f32 %v772, %v843
        %v845 = vrcp.pop %v830
        %v846 = vmul.f32 %v774, %v845
        %847 = vrot.lane.b32.xlu0 %v311, 32
        %v848 = vpop.permute.xlu0 %847
        %849 = vrot.lane.b32.xlu0 %v312, 32
        %v850 = vpop.permute.xlu0 %849
        %851 = vrot.lane.b32.xlu0 %v313, 32
        %v852 = vpop.permute.xlu0 %851
        %853 = vrot.lane.b32.xlu0 %v314, 32
        %v854 = vpop.permute.xlu0 %853
        %855 = vrot.lane.b32.xlu0 %v315, 32
        %v856 = vpop.permute.xlu0 %855
        %857 = vrot.lane.b32.xlu0 %v316, 32
        %v858 = vpop.permute.xlu0 %857
        %859 = vrot.lane.b32.xlu0 %v317, 32
        %v860 = vpop.permute.xlu0 %859
        %861 = vrot.lane.b32.xlu0 %v318, 32
        %v862 = vpop.permute.xlu0 %861
        %871 = vrot.lane.b32.xlu0 %v311, 64
        %v872 = vpop.permute.xlu0 %871
        %873 = vrot.lane.b32.xlu0 %v312, 64
        %v874 = vpop.permute.xlu0 %873
        %875 = vrot.lane.b32.xlu0 %v313, 64
        %v876 = vpop.permute.xlu0 %875
        %877 = vrot.lane.b32.xlu0 %v314, 64
        %v878 = vpop.permute.xlu0 %877
        %879 = vrot.lane.b32.xlu0 %v315, 64
        %v880 = vpop.permute.xlu0 %879
        %881 = vrot.lane.b32.xlu0 %v316, 64
        %v882 = vpop.permute.xlu0 %881
        %883 = vrot.lane.b32.xlu0 %v317, 64
        %v884 = vpop.permute.xlu0 %883
        %885 = vrot.lane.b32.xlu0 %v318, 64
        %v886 = vpop.permute.xlu0 %885
        %895 = vrot.lane.b32.xlu0 %v311, 96
        %v896 = vpop.permute.xlu0 %895
        %897 = vrot.lane.b32.xlu0 %v312, 96
        %v898 = vpop.permute.xlu0 %897
        %899 = vrot.lane.b32.xlu0 %v313, 96
        %v900 = vpop.permute.xlu0 %899
        %901 = vrot.lane.b32.xlu0 %v314, 96
        %v902 = vpop.permute.xlu0 %901
        %903 = vrot.lane.b32.xlu0 %v315, 96
        %v904 = vpop.permute.xlu0 %903
        %905 = vrot.lane.b32.xlu0 %v316, 96
        %v906 = vpop.permute.xlu0 %905
        %907 = vrot.lane.b32.xlu0 %v317, 96
        %v908 = vpop.permute.xlu0 %907
        %909 = vrot.lane.b32.xlu0 %v318, 96
        %v910 = vpop.permute.xlu0 %909
        %v919 = vsel %vm323, %v311, %v848
        %v920 = vsel %vm323, %v312, %v850
        %v921 = vsel %vm323, %v313, %v852
        %v922 = vsel %vm323, %v314, %v854
        %v923 = vsel %vm323, %v315, %v856
        %v924 = vsel %vm323, %v316, %v858
        %v925 = vsel %vm323, %v317, %v860
        %v926 = vsel %vm323, %v318, %v862
        %vm927 = vcmask 523264
        %v928 = vsel %vm927, %v919, %v872
        %v929 = vsel %vm927, %v920, %v874
        %v930 = vsel %vm927, %v921, %v876
        %v931 = vsel %vm927, %v922, %v878
        %v932 = vsel %vm927, %v923, %v880
        %v933 = vsel %vm927, %v924, %v882
        %v934 = vsel %vm927, %v925, %v884
        %v935 = vsel %vm927, %v926, %v886
        %vm936 = vcmask 785408
        %v937 = vsel %vm936, %v928, %v896
        %v938 = vsel %vm936, %v929, %v898
        %v939 = vsel %vm936, %v930, %v900
        %v940 = vsel %vm936, %v931, %v902
        %v941 = vsel %vm936, %v932, %v904
        %v942 = vsel %vm936, %v933, %v906
        %v943 = vsel %vm936, %v934, %v908
        %v944 = vsel %vm936, %v935, %v910
        %946 = vset.pattern.permute.xlu0 0
        %947 = vperm.xlu0 %946, %v832
        %v948 = vpop.permute.xlu0 %947
        %951 = vset.pattern.permute.xlu0 0
        %952 = vperm.xlu0 %951, %v834
        %v953 = vpop.permute.xlu0 %952
        %956 = vset.pattern.permute.xlu0 0
        %957 = vperm.xlu0 %956, %v836
        %v958 = vpop.permute.xlu0 %957
        %961 = vset.pattern.permute.xlu0 0
        %962 = vperm.xlu0 %961, %v838
        %v963 = vpop.permute.xlu0 %962
        %966 = vset.pattern.permute.xlu0 0
        %967 = vperm.xlu0 %966, %v840
        %v968 = vpop.permute.xlu0 %967
        %971 = vset.pattern.permute.xlu0 0
        %972 = vperm.xlu0 %971, %v842
        %v973 = vpop.permute.xlu0 %972
        %976 = vset.pattern.permute.xlu0 0
        %977 = vperm.xlu0 %976, %v844
        %v978 = vpop.permute.xlu0 %977
        %981 = vset.pattern.permute.xlu0 0
        %982 = vperm.xlu0 %981, %v846
        %v983 = vpop.permute.xlu0 %982
        %985 = vset.pattern.permute.xlu0 1
        %986 = vperm.xlu0 %985, %v832
        %v987 = vpop.permute.xlu0 %986
        %989 = vset.pattern.permute.xlu0 1
        %990 = vperm.xlu0 %989, %v834
        %v991 = vpop.permute.xlu0 %990
        %993 = vset.pattern.permute.xlu0 1
        %994 = vperm.xlu0 %993, %v836
        %v995 = vpop.permute.xlu0 %994
        %997 = vset.pattern.permute.xlu0 1
        %998 = vperm.xlu0 %997, %v838
        %v999 = vpop.permute.xlu0 %998
        %1001 = vset.pattern.permute.xlu0 1
        %1002 = vperm.xlu0 %1001, %v840
        %v1003 = vpop.permute.xlu0 %1002
        %1005 = vset.pattern.permute.xlu0 1
        %1006 = vperm.xlu0 %1005, %v842
        %v1007 = vpop.permute.xlu0 %1006
        %1009 = vset.pattern.permute.xlu0 1
        %1010 = vperm.xlu0 %1009, %v844
        %v1011 = vpop.permute.xlu0 %1010
        %1013 = vset.pattern.permute.xlu0 1
        %1014 = vperm.xlu0 %1013, %v846
        %v1015 = vpop.permute.xlu0 %1014
        %1017 = vset.pattern.permute.xlu0 2
        %1018 = vperm.xlu0 %1017, %v832
        %v1019 = vpop.permute.xlu0 %1018
        %1021 = vset.pattern.permute.xlu0 2
        %1022 = vperm.xlu0 %1021, %v834
        %v1023 = vpop.permute.xlu0 %1022
        %1025 = vset.pattern.permute.xlu0 2
        %1026 = vperm.xlu0 %1025, %v836
        %v1027 = vpop.permute.xlu0 %1026
        %1029 = vset.pattern.permute.xlu0 2
        %1030 = vperm.xlu0 %1029, %v838
        %v1031 = vpop.permute.xlu0 %1030
        %1033 = vset.pattern.permute.xlu0 2
        %1034 = vperm.xlu0 %1033, %v840
        %v1035 = vpop.permute.xlu0 %1034
        %1037 = vset.pattern.permute.xlu0 2
        %1038 = vperm.xlu0 %1037, %v842
        %v1039 = vpop.permute.xlu0 %1038
        %1041 = vset.pattern.permute.xlu0 2
        %1042 = vperm.xlu0 %1041, %v844
        %v1043 = vpop.permute.xlu0 %1042
        %1045 = vset.pattern.permute.xlu0 2
        %1046 = vperm.xlu0 %1045, %v846
        %v1047 = vpop.permute.xlu0 %1046
        %1049 = vset.pattern.permute.xlu0 3
        %1050 = vperm.xlu0 %1049, %v832
        %v1051 = vpop.permute.xlu0 %1050
        %1053 = vset.pattern.permute.xlu0 3
        %1054 = vperm.xlu0 %1053, %v834
        %v1055 = vpop.permute.xlu0 %1054
        %1057 = vset.pattern.permute.xlu0 3
        %1058 = vperm.xlu0 %1057, %v836
        %v1059 = vpop.permute.xlu0 %1058
        %1061 = vset.pattern.permute.xlu0 3
        %1062 = vperm.xlu0 %1061, %v838
        %v1063 = vpop.permute.xlu0 %1062
        %1065 = vset.pattern.permute.xlu0 3
        %1066 = vperm.xlu0 %1065, %v840
        %v1067 = vpop.permute.xlu0 %1066
        %1069 = vset.pattern.permute.xlu0 3
        %1070 = vperm.xlu0 %1069, %v842
        %v1071 = vpop.permute.xlu0 %1070
        %1073 = vset.pattern.permute.xlu0 3
        %1074 = vperm.xlu0 %1073, %v844
        %v1075 = vpop.permute.xlu0 %1074
        %1077 = vset.pattern.permute.xlu0 3
        %1078 = vperm.xlu0 %1077, %v846
        %v1079 = vpop.permute.xlu0 %1078
        %v1081 = vsel %vm323, %v948, %v987
        %v1082 = vsel %vm323, %v953, %v991
        %v1083 = vsel %vm323, %v958, %v995
        %v1084 = vsel %vm323, %v963, %v999
        %v1085 = vsel %vm323, %v968, %v1003
        %v1086 = vsel %vm323, %v973, %v1007
        %v1087 = vsel %vm323, %v978, %v1011
        %v1088 = vsel %vm323, %v983, %v1015
        %v1089 = vsel %vm927, %v1081, %v1019
        %v1090 = vsel %vm927, %v1082, %v1023
        %v1091 = vsel %vm927, %v1083, %v1027
        %v1092 = vsel %vm927, %v1084, %v1031
        %v1093 = vsel %vm927, %v1085, %v1035
        %v1094 = vsel %vm927, %v1086, %v1039
        %v1095 = vsel %vm927, %v1087, %v1043
        %v1096 = vsel %vm927, %v1088, %v1047
        %v1097 = vsel %vm936, %v1089, %v1051
        %v1098 = vsel %vm936, %v1090, %v1055
        %v1099 = vsel %vm936, %v1091, %v1059
        %v1100 = vsel %vm936, %v1092, %v1063
        %v1101 = vsel %vm936, %v1093, %v1067
        %v1102 = vsel %vm936, %v1094, %v1071
        %v1103 = vsel %vm936, %v1095, %v1075
        %v1104 = vsel %vm936, %v1096, %v1079
        %v1105 = vmul.f32 %v1097, %v937
        %v1106 = vmul.f32 %v1098, %v938
        %v1107 = vmul.f32 %v1099, %v939
        %v1108 = vmul.f32 %v1100, %v940
        %v1109 = vmul.f32 %v1101, %v941
        %v1110 = vmul.f32 %v1102, %v942
        %v1111 = vmul.f32 %v1103, %v943
        %v1112 = vmul.f32 %v1104, %v944
        %v1113 = vrot.slane %v1105, 4
        %v1114 = vadd.f32 %v1105, %v1113
        %v1115 = vrot.slane %v1114, 2
        %v1116 = vadd.f32 %v1114, %v1115
        %v1117 = vrot.slane %v1116, 1
        %v1118 = vadd.f32 %v1116, %v1117
        %v1119 = vrot.slane %v1106, 4
        %v1120 = vadd.f32 %v1106, %v1119
        %v1121 = vrot.slane %v1120, 2
        %v1122 = vadd.f32 %v1120, %v1121
        %v1123 = vrot.slane %v1122, 1
        %v1124 = vadd.f32 %v1122, %v1123
        %v1125 = vrot.slane %v1107, 4
        %v1126 = vadd.f32 %v1107, %v1125
        %v1127 = vrot.slane %v1126, 2
        %v1128 = vadd.f32 %v1126, %v1127
        %v1129 = vrot.slane %v1128, 1
        %v1130 = vadd.f32 %v1128, %v1129
        %v1131 = vrot.slane %v1108, 4
        %v1132 = vadd.f32 %v1108, %v1131
        %v1133 = vrot.slane %v1132, 2
        %v1134 = vadd.f32 %v1132, %v1133
        %v1135 = vrot.slane %v1134, 1
        %v1136 = vadd.f32 %v1134, %v1135
        %v1137 = vrot.slane %v1109, 4
        %v1138 = vadd.f32 %v1109, %v1137
        %v1139 = vrot.slane %v1138, 2
        %v1140 = vadd.f32 %v1138, %v1139
        %v1141 = vrot.slane %v1140, 1
        %v1142 = vadd.f32 %v1140, %v1141
        %v1143 = vrot.slane %v1110, 4
        %v1144 = vadd.f32 %v1110, %v1143
        %v1145 = vrot.slane %v1144, 2
        %v1146 = vadd.f32 %v1144, %v1145
        %v1147 = vrot.slane %v1146, 1
        %v1148 = vadd.f32 %v1146, %v1147
        %v1149 = vrot.slane %v1111, 4
        %v1150 = vadd.f32 %v1111, %v1149
        %v1151 = vrot.slane %v1150, 2
        %v1152 = vadd.f32 %v1150, %v1151
        %v1153 = vrot.slane %v1152, 1
        %v1154 = vadd.f32 %v1152, %v1153
        %v1155 = vrot.slane %v1112, 4
        %v1156 = vadd.f32 %v1112, %v1155
        %v1157 = vrot.slane %v1156, 2
        %v1158 = vadd.f32 %v1156, %v1157
        %v1159 = vrot.slane %v1158, 1
        %v1160 = vadd.f32 %v1158, %v1159
        %vm1169 = vcmask 1041409
        %v1170 = vsel %vm1169, %v1124, %v1118
        %vm1171 = vcmask 1042434
        %v1172 = vsel %vm1171, %v1130, %v1170
        %vm1173 = vcmask 1043459
        %v1174 = vsel %vm1173, %v1136, %v1172
        %vm1175 = vcmask 1044484
        %v1176 = vsel %vm1175, %v1142, %v1174
        %vm1177 = vcmask 1045509
        %v1178 = vsel %vm1177, %v1148, %v1176
        %vm1179 = vcmask 1046534
        %v1180 = vsel %vm1179, %v1154, %v1178
        %vm1181 = vcmask 1047559
        %v1182 = vsel %vm1181, %v1160, %v1180
        %1184 = vst [vmem:[%s300] sm:$0xff] %v1182
        %s1185 = sand.u32 %s187, 1
        %s1186 = scalar_lea.sflag [#allocation4], %s1185
        %s1187 = sand.u32 %s187, 1
        %s1188 = smul.addr %s1187, 8
        %s1189 = scalar_lea.vmem [#allocation5], %s1188
        // Predicated region
        $region53: #{tpu_custom_call.1} parent=47 // pred_check
          %p1190 = pneg %p197
        $region54: #{tpu_custom_call.1} parent=47 // pred_check_branch
          %1192 = sbr.rel (%p1190) target = $region56
        $region55: #{tpu_custom_call.1} parent=47 // pred_region
          %s1194 = ssub.s32 128, 128
          %1195 = vsyncadd %s1186, %s1194
          %s1196 = smul.addr %s22, 128
          %s1197 = scalar_lea.hbm %s7, %s1196
          %s1199 = sshll.u32 %s1189, 4
          %s1200 = int_to_ptr.vmem [resolvable:$true] %s1199
          %1202 = dma.vmem_to_hbm [thread:$0]  %s1200, 128, %s1197, %s1186
        $region56: #{tpu_custom_call.1} parent=47 // pred_fallthru
          _
      $region48: #{tpu_custom_call.1} parent=5 // pred_fallthru
        _
      %p1203 = scmp.le.s32.totalorder 2, %s17
      // Predicated region
      $region57: #{tpu_custom_call.1} parent=5 // pred_check
        %p1204 = pneg %p1203
      $region58: #{tpu_custom_call.1} parent=5 // pred_check_branch
        %1206 = sbr.rel (%p1204) target = $region60
      $region59: #{tpu_custom_call.1} parent=5 // pred_region
        %s1207 = ssub.s32 %s17, 2
        // Predicated region
        $region61: #{tpu_custom_call.1} parent=59 // pred_check
          %p1208 = pneg %p203
        $region62: #{tpu_custom_call.1} parent=59 // pred_check_branch
          %1210 = sbr.rel (%p1208) target = $region64
        $region63: #{tpu_custom_call.1} parent=59 // pred_region
          %s1211 = sand.u32 %s188, 1
          %s1212 = scalar_lea.sflag [#allocation4], %s1211
          %s1213 = sand.u32 %s188, 1
          %s1214 = smul.addr %s1213, 8
          %s1215 = scalar_lea.vmem [#allocation5], %s1214
          %1216 = dma.done %s1212, 128
        $region64: #{tpu_custom_call.1} parent=59 // pred_fallthru
          _
      $region60: #{tpu_custom_call.1} parent=5 // pred_fallthru
        _
    $region6: #{tpu_custom_call.1} parent=1 // loop_footer
      %s21 = sadd.s32 1, %s17
    $region7: #{tpu_custom_call.1} parent=1 // loop_footer_branch
      %16 = sbr.rel target = $region3
    $region8: #{tpu_custom_call.1} parent=1 // loop_exit
      _
    %1217 = vsyncpa [#allocation3], 1
    %s1218 = scalar_lea.sflag [#allocation3], 1
    %1219 = vsyncpa %s1218, 1
    %1220 = vsyncpa [#allocation4], 1
    %s1221 = scalar_lea.sflag [#allocation4], 1
    %1222 = vsyncpa %s1221, 1

</llo_original>
